<compile_context>
chip_gen: v5e
topology: v5e:2x2
jax: 0.10.0
libtpu: 0.0.40
codegen_flags: <defaults>
</compile_context>

<pallas_src>
import functools

import jax
import jax.numpy as jnp
import numpy as np
from jax.experimental import pallas as pl
from jax.experimental.pallas import tpu as pltpu

_SUB = 8          # sublane multiple
_LANE = 128       # lane width
_TARGET_BLOCK_BYTES = 2 * 1024 * 1024  # ~2 MiB per block buffer (in + out doubled-buffered < 8 MiB)


# ---------------------------------------------------------------------------
# Pallas kernels (elementwise hot path)
# ---------------------------------------------------------------------------
def _mul_kernel(x_ref, s_ref, o_ref):
    # o = x * scale_row    (scale_row is (1, L), broadcasts over the row tile)
    o_ref[...] = x_ref[...] * s_ref[...]


def _clamp_min_kernel(x_ref, o_ref, *, noise):
    # ensure(value, constraints.positive): clamp(value, min=noise)
    # (noise cast to input dtype to match torch.clamp semantics; underflows to
    #  0 for fp16 inputs exactly as the PyTorch reference would).
    o_ref[...] = jnp.maximum(x_ref[...], jnp.asarray(noise, x_ref.dtype))


# ---------------------------------------------------------------------------
# Tiling helpers
# ---------------------------------------------------------------------------
def _pick_tm(m, lanes, itemsize):
    """Row-tile: largest multiple of 8 (<= m) keeping the block ~2 MiB."""
    if m <= _SUB:
        return int(m)  # block equals full array dim (allowed by the (8,128) rule)
    budget = (_TARGET_BLOCK_BYTES // max(1, lanes * itemsize)) // _SUB * _SUB
    budget = max(_SUB, budget)
    return int(min(budget, (m // _SUB) * _SUB))


def _scale_pallas_call(x2, s_row):
    m, lanes = x2.shape
    tm = _pick_tm(m, lanes, x2.dtype.itemsize)
    return pl.pallas_call(
        _mul_kernel,
        out_shape=jax.ShapeDtypeStruct((m, lanes), x2.dtype),
        grid=(pl.cdiv(m, tm),),
        in_specs=[
            pl.BlockSpec((tm, lanes), lambda i: (i, 0)),
            pl.BlockSpec((1, lanes), lambda i: (0, 0)),
        ],
        out_specs=pl.BlockSpec((tm, lanes), lambda i: (i, 0)),
        compiler_params=pltpu.CompilerParams(dimension_semantics=("parallel",)),
    )(x2, s_row)


def _apply_scale(x, scale_vec):
    """x * scale_vec, with scale_vec broadcast over the trailing axis."""
    if x.size == 0:
        return x
    orig_shape = x.shape
    if x.ndim == 0:
        x2 = x.reshape(1, 1)
        d = 1
    else:
        d = orig_shape[-1]
        x2 = x.reshape(-1, d)
    m = x2.shape[0]

    # replicate PyTorch broadcasting: a size-1 scale broadcasts to any D
    s = jnp.broadcast_to(scale_vec.astype(x2.dtype).reshape(-1), (d,))

    # Lane-dense repack: merge rows so the lane axis is a full 128 wide.
    # (contiguous reshape -> no data movement; scale is tiled to the new width)
    if d < _LANE and (_LANE % d == 0):
        r = _LANE // d
        if m % r == 0:
            x2 = x2.reshape(m // r, r * d)
            s = jnp.tile(s, r)
            m, d = m // r, r * d

    out = _scale_pallas_call(x2, s.reshape(1, d))
    return out.reshape(orig_shape)


def ensure_positive(value, noise=1e-15):
    """Pallas port of ensure(value, constraints.positive)."""
    # TODO(synk): other constraint branches (greater_than/less_than/simplex/
    # unit_interval) are not used by BaseLikelihood itself and are not ported.
    if value.size == 0:
        return value
    orig_shape = value.shape
    n = value.size

    x2 = None
    for lanes in (512, 256, 128):           # lane-dense flattening when possible
        if n % lanes == 0:
            x2 = value.reshape(n // lanes, lanes)
            break
    if x2 is None:                          # fallback: keep trailing dim on lanes
        d = orig_shape[-1] if value.ndim >= 1 else 1
        x2 = value.reshape(-1, max(int(d), 1))

    m, lanes = x2.shape
    tm = _pick_tm(m, lanes, x2.dtype.itemsize)
    out = pl.pallas_call(
        functools.partial(_clamp_min_kernel, noise=noise),
        out_shape=jax.ShapeDtypeStruct((m, lanes), x2.dtype),
        grid=(pl.cdiv(m, tm),),
        in_specs=[pl.BlockSpec((tm, lanes), lambda i: (i, 0))],
        out_specs=pl.BlockSpec((tm, lanes), lambda i: (i, 0)),
        compiler_params=pltpu.CompilerParams(dimension_semantics=("parallel",)),
    )(x2)
    return out.reshape(orig_shape)


# ---------------------------------------------------------------------------
# Module replica
# ---------------------------------------------------------------------------
class BaseLikelihoodPallas:
    arg_constraints = {}
    is_discrete = False

    def __init__(self, *, domain_size=1, ensure_args=True):
        self._domain_size = domain_size
        self.ensure_args = ensure_args
        self._counter = 0
        self.training = True
        # register_buffer('_scale', torch.ones([domain_size]))
        self._set_scale(jnp.ones((domain_size,), dtype=jnp.float32))

    # --- scale buffer (with cached reciprocal, hoisted out of the hot path) ---
    def _set_scale(self, value):
        self._scale = value
        # x / scale == x * (1/scale): the divide of a D-element vector here is
        # essentially free and lets the kernel use a plain VPU multiply.
        # (~1 ulp difference vs true divide; scale==0 still yields inf/nan,
        #  matching the unguarded PyTorch original.)
        self._inv_scale = 1.0 / value

    @property
    def num_params(self):
        return len(self.arg_constraints)

    @property
    def domain_size(self):
        return self._domain_size

    @property
    def scale(self):
        return self._scale if not self.is_discrete else jnp.ones_like(self._scale)

    @property
    def inv_scale(self):
        return self._inv_scale if not self.is_discrete else jnp.ones_like(self._inv_scale)

    @scale.setter
    def scale(self, value):
        value = jnp.asarray(value, dtype=jnp.float32)
        if value.size == 1 and self._domain_size == 1:
            value = jnp.ones((1,), jnp.float32) * value.reshape(())
        value = value.reshape(-1)
        assert value.shape == (self._domain_size,), value.shape
        self._set_scale(value)

    # --- forward-pass compute (Pallas kernels) ---
    def transform_data(self, x):
        return _apply_scale(x, self.scale)

    def inverse_transform_data(self, x):
        return _apply_scale(x, self.inv_scale)

    def get_params(self, *params):
        return params

    def __rshift__(self, data):
        return self.transform_data(data)

    def __lshift__(self, data):
        return self.inverse_transform_data(data)

    def __len__(self):
        return 1

    def __getitem__(self, item):
        assert item == 0
        return self

    # InputScaler.forward(data) == self >> data
    def input_scaler(self, data):
        return self >> data


# ---------------------------------------------------------------------------
if __name__ == "__main__":
    key = jax.random.PRNGKey(0)
    B, F, D = 2, 64, 8  # batch, features, domain_size
    x = jax.random.normal(key, (B, F, D), dtype=jnp.float32)

    lik = BaseLikelihoodPallas(domain_size=D)
    # deterministic, non-trivial scale buffer
    lik.scale = jnp.linspace(0.5, 2.0, D, dtype=jnp.float32)

    y = lik >> x            # transform_data:  x * scale   (lane-dense path)
    z = lik << y            # inverse_transform_data:  y * (1/scale)
    e = ensure_positive(x)  # ensure(x, constraints.positive)

    # shape whose row count does not repack to 128 lanes -> ragged fallback path
    x_r = jax.random.normal(jax.random.PRNGKey(1), (3, 10, D), dtype=jnp.float32)
    y_r = lik >> x_r

    jax.block_until_ready((y, z, e, y_r))

    # reference checks
    x_np = np.asarray(x)
    s_np = np.asarray(lik.scale)
    np.testing.assert_allclose(np.asarray(y), x_np * s_np, rtol=1e-6, atol=1e-6)
    np.testing.assert_allclose(np.asarray(z), x_np, rtol=1e-5, atol=1e-6)
    np.testing.assert_allclose(np.asarray(e), np.maximum(x_np, 1e-15), rtol=0, atol=0)
    np.testing.assert_allclose(
        np.asarray(y_r), np.asarray(x_r) * s_np, rtol=1e-6, atol=1e-6)

    print("KERNEL_OK")
</pallas_src>

<mosaic_0001>
module attributes {stable_mosaic.version = 11 : i64} {
  func.func @_mul_kernel(%arg0: i32, %arg1: memref<8x128xf32, #tpu.memory_space<vmem>>, %arg2: memref<1x128xf32, #tpu.memory_space<vmem>>, %arg3: memref<8x128xf32, #tpu.memory_space<vmem>>) attributes {dimension_semantics = [#tpu.dimension_semantics<parallel>], iteration_bounds = array<i64: 1>, scalar_prefetch = 0 : i64, scratch_operands = 0 : i64, tpu.core_type = #tpu.core_type<tc>, window_params = [{transform_indices = @transform_0, window_bounds = array<i64: 8, 128>}, {pipeline_mode = #tpu.pipeline_mode<synchronous>, transform_indices = @transform_1, window_bounds = array<i64: 1, 128>}, {transform_indices = @transform_2, window_bounds = array<i64: 8, 128>}]} {
    %c0 = arith.constant 0 : index
    %c0_0 = arith.constant 0 : index
    %0 = vector.load %arg1[%c0, %c0_0] : memref<8x128xf32, #tpu.memory_space<vmem>>, vector<8x128xf32>
    %c0_1 = arith.constant 0 : index
    %c0_2 = arith.constant 0 : index
    %1 = vector.load %arg2[%c0_1, %c0_2] : memref<1x128xf32, #tpu.memory_space<vmem>>, vector<1x128xf32>
    %2 = vector.broadcast %1 : vector<1x128xf32> to vector<8x128xf32>
    %3 = arith.mulf %0, %2 : vector<8x128xf32>
    %c0_3 = arith.constant 0 : index
    %c0_4 = arith.constant 0 : index
    %4 = vector.load %arg3[%c0_3, %c0_4] : memref<8x128xf32, #tpu.memory_space<vmem>>, vector<8x128xf32>
    tpu.vector_store %arg3[%c0_3, %c0_4], %3 {strides = array<i32>} : memref<8x128xf32, #tpu.memory_space<vmem>>, vector<8x128xf32>,
    return
  }
  func.func @transform_0(%arg0: i32) -> (i32, i32) {
    %c0_i32 = arith.constant 0 : i32
    %c0_i32_0 = arith.constant 0 : i32
    return %arg0, %c0_i32 : i32, i32
  }
  func.func @transform_1(%arg0: i32) -> (i32, i32) {
    %c0_i32 = arith.constant 0 : i32
    %c0_i32_0 = arith.constant 0 : i32
    %c0_i32_1 = arith.constant 0 : i32
    return %c0_i32, %c0_i32_0 : i32, i32
  }
  func.func @transform_2(%arg0: i32) -> (i32, i32) {
    %c0_i32 = arith.constant 0 : i32
    %c0_i32_0 = arith.constant 0 : i32
    return %arg0, %c0_i32 : i32, i32
  }
}

</mosaic_0001>

<llo_original>
// kernel: tpu_custom_call.1
$region0: #{tpu_custom_call.1}
  #allocation0 [shape = 'u32[]', space=smem, size = 0x4, offset = 0x4, fixed_abs, tag = 'smem constant byte address 0x4 - core index']
  #allocation1 [shape = 'u32[72,128]{1,0:T(1,128)}', space=vmem, size = 0x9000, scoped, tag = 'internal scratch']
  %s0 = inlined_call_operand.hbm [shape: f32[8,128], index: 0, kind: input, shape index: {}]
  %s1 = inlined_call_operand.hbm [shape: f32[1,128], index: 1, kind: input, shape index: {}]
  %s2 = inlined_call_operand.hbm [shape: f32[8,128], index: 2, kind: output, shape index: {}]
  %s3 = sld [smem:[#allocation0]]
  $region26: #{tpu_custom_call.1} parent=0
    _
  %s5 = ssub.s32 1, %s3
  %s6 = scalar_select 0, %s5, %s3
  $region1: #{tpu_custom_call.1} parent=0
    #allocation2 [shape = 'u8[4096]{0}', space=vmem, size = 0x1000, scoped, tag = 'input window, operand 0, single buffered']
    #allocation3 [shape = 's32[1]{0}', space=sflag, size = 0x4, scoped, tag = 'scoped memory for tpu_custom_call.1']
    #allocation4 [shape = 's32[1]{0}', space=sflag, size = 0x4, scoped, tag = 'scoped memory for tpu_custom_call.1']
    #allocation5 [shape = 'u8[512]{0}', space=vmem, size = 0x400, scoped, tag = 'input window, operand 1, single buffered']
    #allocation6 [shape = 's32[1]{0}', space=sflag, size = 0x4, scoped, tag = 'scoped memory for tpu_custom_call.1']
    #allocation7 [shape = 'u8[4096]{0}', space=vmem, size = 0x1000, scoped, tag = 'output window, operand 0, single buffered']
    %7 = vsyncpa [#allocation3], 0
    %8 = vsyncpa [#allocation6], 0
    %9 = vsyncpa [#allocation4], 0
    // Predicated region
    $region2: #{tpu_custom_call.1} parent=1 // pred_check
      _
    $region3: #{tpu_custom_call.1} parent=1 // pred_check_branch
      %11 = sbr.rel (0) target = $region5
    $region4: #{tpu_custom_call.1} parent=1 // pred_region
      %13 = vsyncadd [#allocation3], 0
      %s15 = sshll.u32 %s0, 4
      %s16 = int_to_ptr.hbm [resolvable:$true] %s15
      %s17 = sshll.u32 [#allocation2], 4
      %s18 = int_to_ptr.vmem [resolvable:$true] %s17
      %20 = dma.hbm_to_vmem [thread:$0]  %s16, 128, %s18, [#allocation3]
    $region5: #{tpu_custom_call.1} parent=1 // pred_fallthru
      _
    // Predicated region
    $region6: #{tpu_custom_call.1} parent=1 // pred_check
      _
    $region7: #{tpu_custom_call.1} parent=1 // pred_check_branch
      %22 = sbr.rel (0) target = $region9
    $region8: #{tpu_custom_call.1} parent=1 // pred_region
      %24 = vsyncadd [#allocation6], 0
      %s26 = sshll.u32 %s1, 4
      %s27 = int_to_ptr.hbm [resolvable:$true] %s26
      %s28 = sshll.u32 [#allocation5], 4
      %s29 = int_to_ptr.vmem [resolvable:$true] %s28
      %31 = dma.hbm_to_vmem [thread:$0]  %s27, 16, %s29, [#allocation6]
    $region9: #{tpu_custom_call.1} parent=1 // pred_fallthru
      _
    // Predicated region
    $region10: #{tpu_custom_call.1} parent=1 // pred_check
      _
    $region11: #{tpu_custom_call.1} parent=1 // pred_check_branch
      %33 = sbr.rel (0) target = $region13
    $region12: #{tpu_custom_call.1} parent=1 // pred_region
      %35 = dma.done [#allocation3], 128
    $region13: #{tpu_custom_call.1} parent=1 // pred_fallthru
      _
    // Predicated region
    $region14: #{tpu_custom_call.1} parent=1 // pred_check
      _
    $region15: #{tpu_custom_call.1} parent=1 // pred_check_branch
      %37 = sbr.rel (0) target = $region17
    $region16: #{tpu_custom_call.1} parent=1 // pred_region
      %39 = dma.done [#allocation6], 16
    $region17: #{tpu_custom_call.1} parent=1 // pred_fallthru
      _
    %v40 = vld [vmem:[#allocation2] sm:$0xff]
    %v41 = vld [vmem:[#allocation5] sm:$0x1]
    %v43 = vperm.slane %v41, 0
    %v45 = vmul.f32 %v40, %v43
    %46 = vst [vmem:[#allocation7] sm:$0xff] %v45
    // Predicated region
    $region18: #{tpu_custom_call.1} parent=1 // pred_check
      _
    $region19: #{tpu_custom_call.1} parent=1 // pred_check_branch
      %48 = sbr.rel (0) target = $region21
    $region20: #{tpu_custom_call.1} parent=1 // pred_region
      %50 = vsyncadd [#allocation4], 0
      %s52 = sshll.u32 [#allocation7], 4
      %s53 = int_to_ptr.vmem [resolvable:$true] %s52
      %s54 = sshll.u32 %s2, 4
      %s55 = int_to_ptr.hbm [resolvable:$true] %s54
      %57 = dma.vmem_to_hbm [thread:$0]  %s53, 128, %s55, [#allocation4]
    $region21: #{tpu_custom_call.1} parent=1 // pred_fallthru
      _
    // Predicated region
    $region22: #{tpu_custom_call.1} parent=1 // pred_check
      _
    $region23: #{tpu_custom_call.1} parent=1 // pred_check_branch
      %59 = sbr.rel (0) target = $region25
    $region24: #{tpu_custom_call.1} parent=1 // pred_region
      %61 = dma.done [#allocation4], 128
    $region25: #{tpu_custom_call.1} parent=1 // pred_fallthru
      _
    %62 = vsyncpa [#allocation3], 1
    %63 = vsyncpa [#allocation6], 1
    %64 = vsyncpa [#allocation4], 1

</llo_original>
